<compile_context>
chip_gen: v7x
topology: tpu7x:2x2x1
jax: 0.10.0
libtpu: 0.0.40
codegen_flags: <defaults>
</compile_context>

<pallas_src>
import functools

import jax
import jax.numpy as jnp
from jax.experimental import pallas as pl
from jax.experimental.pallas import tpu as pltpu


def _ce_kernel(pred_ref, idx_ref, sum_ref, *, hw, n_classes, rows_per_block,
               blocks_per_split):
    s = pl.program_id(1)
    j = pl.program_id(2)

    @pl.when(j == 0)
    def _():
        sum_ref[...] = jnp.zeros_like(sum_ref)

    # Dense (R, 128) slabs: pixels occupy both sublanes and lanes (full vregs).
    idx = idx_ref[0, 0].astype(jnp.int32)                        # (R, 128)
    rows = [pred_ref[0, c].astype(jnp.float32)                   # (R, 128) per class
            for c in range(n_classes)]

    # Unrolled class reduction on the VPU (C is small and static).
    m = rows[0]
    for c in range(1, n_classes):
        m = jnp.maximum(m, rows[c])
    ssum = jnp.exp(rows[0] - m)
    picked = rows[0]                  # idx==0 pixels are discarded by the mask below
    for c in range(1, n_classes):
        ssum = ssum + jnp.exp(rows[c] - m)
        picked = jnp.where(idx == c, rows[c], picked)
    ce = m + jnp.log(ssum) - picked                              # (R, 128) per-pixel CE

    # Mask: ragged tail (incl. clamped duplicate row-blocks) + ignore_index == 0.
    base_row = (s * blocks_per_split + j) * rows_per_block
    row_ids = jax.lax.broadcasted_iota(jnp.int32, ce.shape, 0)
    lane_ids = jax.lax.broadcasted_iota(jnp.int32, ce.shape, 1)
    pix = (base_row + row_ids) * 128 + lane_ids
    ok = (pix < hw) & (idx != 0)
    # NOTE: keep the select (not ce * ok): garbage tail logits (NaN/Inf) must be dropped.
    partial = jnp.sum(jnp.where(ok, ce, 0.0), axis=0, keepdims=True)   # (1, 128) XLU
    sum_ref[...] = sum_ref[...] + partial[None]


def _choose_rows(n_classes, dtype):
    """Rows (x128 lanes) per block so the logits tile is ~4 MiB; multiple of 32 rows."""
    budget_bytes = 4 * 1024 * 1024
    bytes_per_row = n_classes * 128 * jnp.dtype(dtype).itemsize
    r = max(32, budget_bytes // bytes_per_row)
    return int((r // 32) * 32)


@functools.partial(jax.jit, static_argnames=("hw", "r_block", "n_splits"))
def _ce_sums(pred4, idx4, *, hw, r_block, n_splits):
    """pred4: (N,C,R,128) logits; idx4: (N,1,R,128) int8/int32. Returns scalar f32 sum."""
    n, c, r_total, _ = pred4.shape
    total_blocks = -(-r_total // r_block)
    bps = -(-total_blocks // n_splits)

    kernel = functools.partial(_ce_kernel, hw=hw, n_classes=c,
                               rows_per_block=r_block, blocks_per_split=bps)

    def row_block(s, j):
        # Clamp so an over-range (s, j) re-reads the last block; its contribution is
        # fully masked out in the kernel via the pix < hw check.
        return jnp.minimum(s * bps + j, total_blocks - 1)

    sums = pl.pallas_call(
        kernel,
        out_shape=jax.ShapeDtypeStruct((n * n_splits, 1, 128), jnp.float32),
        grid_spec=pltpu.PrefetchScalarGridSpec(
            num_scalar_prefetch=0,
            grid=(n, n_splits, bps),
            in_specs=[
                pl.BlockSpec((1, c, r_block, 128),
                             lambda i, s, j: (i, 0, row_block(s, j), 0)),
                pl.BlockSpec((1, 1, r_block, 128),
                             lambda i, s, j: (i, 0, row_block(s, j), 0)),
            ],
            out_specs=pl.BlockSpec((1, 1, 128),
                                   lambda i, s, j: (i * n_splits + s, 0, 0)),
        ),
        compiler_params=pltpu.CompilerParams(
            dimension_semantics=("parallel", "parallel", "arbitrary"),
            vmem_limit_bytes=32 * 1024 * 1024),
    )(pred4, idx4)
    return jnp.sum(sums)


def _prepare_target(target):
    """(N,C,H,W) one-hot -> ((N,1,HWpad/128,128) index table, valid-pixel count, HW)."""
    n, c, h, w = target.shape
    hw = h * w
    idx_dtype = jnp.int8 if c <= 127 else jnp.int32
    idx = jnp.argmax(target, axis=1).astype(idx_dtype).reshape(n, 1, hw)
    valid_cnt = jnp.sum(idx != 0).astype(jnp.float32)      # hoisted across depth levels
    hw_pad = -(-hw // 128) * 128
    if hw_pad != hw:
        idx = jnp.pad(idx, ((0, 0), (0, 0), (0, hw_pad - hw)))
    return idx.reshape(n, 1, hw_pad // 128, 128), valid_cnt, hw


def _ce_single(pred_nchw, idx4, valid_cnt, hw):
    n, c, h, w = pred_nchw.shape
    assert h * w == hw, "prediction and target spatial sizes must match"
    r_total = idx4.shape[2]
    hw_pad = r_total * 128
    pred = pred_nchw.reshape(n, c, hw)                      # free: already class-major
    if hw_pad != hw:
        pred = jnp.pad(pred, ((0, 0), (0, 0), (0, hw_pad - hw)))
    pred4 = pred.reshape(n, c, r_total, 128)                # free, contiguous reshape

    r_block = min(_choose_rows(c, pred4.dtype), r_total)
    total_blocks = -(-r_total // r_block)
    # Guarantee >= 2 parallel grid slices so v7x megacore uses both TCs even at N == 1.
    n_splits = 1 if n >= 2 else (2 if total_blocks >= 2 else 1)

    total = _ce_sums(pred4, idx4, hw=hw, r_block=r_block, n_splits=n_splits)
    # NOTE: if no pixel has target != 0, this is 0/0 = NaN (matches PyTorch behaviour).
    return total / valid_cnt


class CrossEntropyLossPallas:
    """Mirror of the PyTorch module (depth / weights for deep supervision)."""

    def __init__(self, depth=1, weights=None, **kwargs):
        self.depth = depth
        self.weights = weights if weights is not None else depth * [1]

    def __call__(self, prediction, target, deep_supervision=False):
        # Target argmax + valid count computed once and reused across all depth levels.
        idx4, valid_cnt, hw = _prepare_target(target)
        if deep_supervision:
            loss = 0.0
            for c in range(self.depth):
                loss = loss + _ce_single(prediction[c], idx4, valid_cnt, hw) * self.weights[c]
            return loss / sum(self.weights)
        return _ce_single(prediction, idx4, valid_cnt, hw)


def _reference(prediction, target):
    # pure-JAX reference of nn.CrossEntropyLoss(ignore_index=0) with argmax'd one-hot target
    tgt_idx = jnp.argmax(target, axis=1)                        # (N,H,W)
    logp = jax.nn.log_softmax(prediction.astype(jnp.float32), axis=1)
    picked = jnp.take_along_axis(logp, tgt_idx[:, None], axis=1)[:, 0]
    valid = (tgt_idx != 0).astype(jnp.float32)
    return jnp.sum(-picked * valid) / jnp.sum(valid)


if __name__ == "__main__":
    key = jax.random.PRNGKey(0)
    k1, k2, k3 = jax.random.split(key, 3)

    N, C, H, W = 2, 4, 16, 16
    prediction = jax.random.normal(k1, (N, C, H, W), dtype=jnp.float32)
    labels = jax.random.randint(k2, (N, H, W), 0, C)            # includes class 0 (ignored)
    target = jax.nn.one_hot(labels, C, axis=1, dtype=jnp.float32)  # one-hot NCHW

    # plain forward
    loss_fn = CrossEntropyLossPallas()
    loss = jax.block_until_ready(loss_fn(prediction, target))
    ref = _reference(prediction, target)
    assert jnp.allclose(loss, ref, rtol=1e-5, atol=1e-5), (loss, ref)

    # deep-supervision forward (target argmax / count hoisted, weighted mean)
    pred2 = jax.random.normal(k3, (N, C, H, W), dtype=jnp.float32)
    ds_fn = CrossEntropyLossPallas(depth=2, weights=[1.0, 2.0])
    ds_loss = jax.block_until_ready(
        ds_fn([prediction, pred2], target, deep_supervision=True))
    ds_ref = (_reference(prediction, target) * 1.0 + _reference(pred2, target) * 2.0) / 3.0
    assert jnp.allclose(ds_loss, ds_ref, rtol=1e-5, atol=1e-5), (ds_loss, ds_ref)

    print("KERNEL_OK")
</pallas_src>

<mosaic_0001>
module attributes {stable_mosaic.version = 11 : i64} {
  func.func @_ce_kernel(%arg0: i32, %arg1: i32, %arg2: i32, %arg3: memref<1x4x2x128xf32, #tpu.memory_space<vmem>>, %arg4: memref<1x1x2x128xi8, #tpu.memory_space<vmem>>, %arg5: memref<1x1x128xf32, #tpu.memory_space<vmem>>) attributes {dimension_semantics = [#tpu.dimension_semantics<parallel>, #tpu.dimension_semantics<parallel>, #tpu.dimension_semantics<arbitrary>], iteration_bounds = array<i64: 2, 1, 1>, scalar_prefetch = 0 : i64, scratch_operands = 0 : i64, tpu.core_type = #tpu.core_type<tc>, window_params = [{transform_indices = @transform_0, window_bounds = array<i64: 1, 4, 2, 128>}, {transform_indices = @transform_1, window_bounds = array<i64: 1, 1, 2, 128>}, {transform_indices = @transform_2, window_bounds = array<i64: 1, 1, 128>}]} {
    %c0_i32 = arith.constant 0 : i32
    %0 = arith.cmpi eq, %arg2, %c0_i32 : i32
    %1 = arith.extui %0 : i1 to i32
    %c0_i32_0 = arith.constant 0 : i32
    %2 = arith.cmpi ne, %1, %c0_i32_0 : i32
    scf.if %2 {
      %cst_27 = arith.constant 0.000000e+00 : f32
      %63 = vector.broadcast %cst_27 : f32 to vector<1x1x128xf32>
      %c0_28 = arith.constant 0 : index
      %c0_29 = arith.constant 0 : index
      %c0_30 = arith.constant 0 : index
      %64 = vector.load %arg5[%c0_28, %c0_29, %c0_30] : memref<1x1x128xf32, #tpu.memory_space<vmem>>, vector<1x1x128xf32>
      tpu.vector_store %arg5[%c0_28, %c0_29, %c0_30], %63 {strides = array<i32>} : memref<1x1x128xf32, #tpu.memory_space<vmem>>, vector<1x1x128xf32>,
    } else {
    }
    %c0 = arith.constant 0 : index
    %c0_1 = arith.constant 0 : index
    %c0_2 = arith.constant 0 : index
    %c0_3 = arith.constant 0 : index
    %3 = vector.load %arg4[%c0, %c0_1, %c0_2, %c0_3] : memref<1x1x2x128xi8, #tpu.memory_space<vmem>>, vector<1x1x2x128xi8>
    %4 = vector.shape_cast %3 : vector<1x1x2x128xi8> to vector<2x128xi8>
    %5 = arith.extsi %4 : vector<2x128xi8> to vector<2x128xi32>
    %c0_4 = arith.constant 0 : index
    %c0_5 = arith.constant 0 : index
    %c0_6 = arith.constant 0 : index
    %c0_7 = arith.constant 0 : index
    %6 = vector.load %arg3[%c0_4, %c0_5, %c0_6, %c0_7] : memref<1x4x2x128xf32, #tpu.memory_space<vmem>>, vector<1x1x2x128xf32>
    %7 = vector.shape_cast %6 : vector<1x1x2x128xf32> to vector<2x128xf32>
    %c0_8 = arith.constant 0 : index
    %c1 = arith.constant 1 : index
    %c0_9 = arith.constant 0 : index
    %c0_10 = arith.constant 0 : index
    %8 = vector.load %arg3[%c0_8, %c1, %c0_9, %c0_10] : memref<1x4x2x128xf32, #tpu.memory_space<vmem>>, vector<1x1x2x128xf32>
    %9 = vector.shape_cast %8 : vector<1x1x2x128xf32> to vector<2x128xf32>
    %c0_11 = arith.constant 0 : index
    %c2 = arith.constant 2 : index
    %c0_12 = arith.constant 0 : index
    %c0_13 = arith.constant 0 : index
    %10 = vector.load %arg3[%c0_11, %c2, %c0_12, %c0_13] : memref<1x4x2x128xf32, #tpu.memory_space<vmem>>, vector<1x1x2x128xf32>
    %11 = vector.shape_cast %10 : vector<1x1x2x128xf32> to vector<2x128xf32>
    %c0_14 = arith.constant 0 : index
    %c3 = arith.constant 3 : index
    %c0_15 = arith.constant 0 : index
    %c0_16 = arith.constant 0 : index
    %12 = vector.load %arg3[%c0_14, %c3, %c0_15, %c0_16] : memref<1x4x2x128xf32, #tpu.memory_space<vmem>>, vector<1x1x2x128xf32>
    %13 = vector.shape_cast %12 : vector<1x1x2x128xf32> to vector<2x128xf32>
    %14 = arith.maximumf %7, %9 : vector<2x128xf32>
    %15 = arith.maximumf %14, %11 : vector<2x128xf32>
    %16 = arith.maximumf %15, %13 : vector<2x128xf32>
    %17 = arith.subf %7, %16 : vector<2x128xf32>
    %18 = math.exp %17 : vector<2x128xf32>
    %19 = arith.subf %9, %16 : vector<2x128xf32>
    %20 = math.exp %19 : vector<2x128xf32>
    %21 = arith.addf %18, %20 : vector<2x128xf32>
    %c1_i32 = arith.constant 1 : i32
    %22 = vector.broadcast %c1_i32 : i32 to vector<2x128xi32>
    %23 = arith.cmpi eq, %5, %22 : vector<2x128xi32>
    %24 = arith.select %23, %9, %7 : vector<2x128xi1>, vector<2x128xf32>
    %25 = arith.subf %11, %16 : vector<2x128xf32>
    %26 = math.exp %25 : vector<2x128xf32>
    %27 = arith.addf %21, %26 : vector<2x128xf32>
    %c2_i32 = arith.constant 2 : i32
    %28 = vector.broadcast %c2_i32 : i32 to vector<2x128xi32>
    %29 = arith.cmpi eq, %5, %28 : vector<2x128xi32>
    %30 = arith.select %29, %11, %24 : vector<2x128xi1>, vector<2x128xf32>
    %31 = arith.subf %13, %16 : vector<2x128xf32>
    %32 = math.exp %31 : vector<2x128xf32>
    %33 = arith.addf %27, %32 : vector<2x128xf32>
    %c3_i32 = arith.constant 3 : i32
    %34 = vector.broadcast %c3_i32 : i32 to vector<2x128xi32>
    %35 = arith.cmpi eq, %5, %34 : vector<2x128xi32>
    %36 = arith.select %35, %13, %30 : vector<2x128xi1>, vector<2x128xf32>
    %37 = math.log %33 : vector<2x128xf32>
    %38 = arith.addf %16, %37 : vector<2x128xf32>
    %39 = arith.subf %38, %36 : vector<2x128xf32>
    %c1_i32_17 = arith.constant 1 : i32
    %40 = arith.muli %arg1, %c1_i32_17 : i32
    %41 = arith.addi %40, %arg2 : i32
    %c2_i32_18 = arith.constant 2 : i32
    %42 = arith.muli %41, %c2_i32_18 : i32
    %43 = tpu.iota {dimensions = array<i32: 0>} : vector<2x128xi32>
    %44 = tpu.iota {dimensions = array<i32: 1>} : vector<2x128xi32>
    %45 = vector.broadcast %42 : i32 to vector<2x128xi32>
    %46 = arith.addi %45, %43 : vector<2x128xi32>
    %c128_i32 = arith.constant 128 : i32
    %47 = vector.broadcast %c128_i32 : i32 to vector<2x128xi32>
    %48 = arith.muli %46, %47 : vector<2x128xi32>
    %49 = arith.addi %48, %44 : vector<2x128xi32>
    %c256_i32 = arith.constant 256 : i32
    %50 = vector.broadcast %c256_i32 : i32 to vector<2x128xi32>
    %51 = arith.cmpi slt, %49, %50 : vector<2x128xi32>
    %c0_i32_19 = arith.constant 0 : i32
    %52 = vector.broadcast %c0_i32_19 : i32 to vector<2x128xi32>
    %53 = arith.cmpi ne, %5, %52 : vector<2x128xi32>
    %54 = arith.andi %51, %53 : vector<2x128xi1>
    %cst = arith.constant 0.000000e+00 : f32
    %55 = vector.broadcast %cst : f32 to vector<2x128xf32>
    %56 = arith.select %54, %39, %55 : vector<2x128xi1>, vector<2x128xf32>
    %cst_20 = arith.constant dense<0.000000e+00> : vector<128xf32>
    %57 = vector.multi_reduction <add>, %56, %cst_20 [0] : vector<2x128xf32> to vector<128xf32>
    %58 = vector.shape_cast %57 : vector<128xf32> to vector<1x128xf32>
    %c0_21 = arith.constant 0 : index
    %c0_22 = arith.constant 0 : index
    %c0_23 = arith.constant 0 : index
    %59 = vector.load %arg5[%c0_21, %c0_22, %c0_23] : memref<1x1x128xf32, #tpu.memory_space<vmem>>, vector<1x1x128xf32>
    %60 = vector.shape_cast %58 : vector<1x128xf32> to vector<1x1x128xf32>
    %61 = arith.addf %59, %60 : vector<1x1x128xf32>
    %c0_24 = arith.constant 0 : index
    %c0_25 = arith.constant 0 : index
    %c0_26 = arith.constant 0 : index
    %62 = vector.load %arg5[%c0_24, %c0_25, %c0_26] : memref<1x1x128xf32, #tpu.memory_space<vmem>>, vector<1x1x128xf32>
    tpu.vector_store %arg5[%c0_24, %c0_25, %c0_26], %61 {strides = array<i32>} : memref<1x1x128xf32, #tpu.memory_space<vmem>>, vector<1x1x128xf32>,
    return
  }
  func.func @transform_0(%arg0: i32, %arg1: i32, %arg2: i32) -> (i32, i32, i32, i32) {
    %c1_i32 = arith.constant 1 : i32
    %0 = arith.muli %arg1, %c1_i32 : i32
    %1 = arith.addi %0, %arg2 : i32
    %c0_i32 = arith.constant 0 : i32
    %2 = arith.minsi %1, %c0_i32 : i32
    %c0_i32_0 = arith.constant 0 : i32
    %c0_i32_1 = arith.constant 0 : i32
    %c0_i32_2 = arith.constant 0 : i32
    return %arg0, %c0_i32_0, %2, %c0_i32_1 : i32, i32, i32, i32
  }
  func.func @transform_1(%arg0: i32, %arg1: i32, %arg2: i32) -> (i32, i32, i32, i32) {
    %c1_i32 = arith.constant 1 : i32
    %0 = arith.muli %arg1, %c1_i32 : i32
    %1 = arith.addi %0, %arg2 : i32
    %c0_i32 = arith.constant 0 : i32
    %2 = arith.minsi %1, %c0_i32 : i32
    %c0_i32_0 = arith.constant 0 : i32
    %c0_i32_1 = arith.constant 0 : i32
    %c0_i32_2 = arith.constant 0 : i32
    return %arg0, %c0_i32_0, %2, %c0_i32_1 : i32, i32, i32, i32
  }
  func.func @transform_2(%arg0: i32, %arg1: i32, %arg2: i32) -> (i32, i32, i32) {
    %c1_i32 = arith.constant 1 : i32
    %0 = arith.muli %arg0, %c1_i32 : i32
    %1 = arith.addi %0, %arg1 : i32
    %c0_i32 = arith.constant 0 : i32
    %c0_i32_0 = arith.constant 0 : i32
    %c0_i32_1 = arith.constant 0 : i32
    return %1, %c0_i32, %c0_i32_0 : i32, i32, i32
  }
}

</mosaic_0001>

<llo_original>
// kernel: _ce_sums.1
$region0: #{_ce_sums.1}
  #allocation0 [shape = 'u32[]', space=smem, size = 0x4, offset = 0x4, fixed_abs, tag = 'smem constant byte address 0x4 - core index']
  #allocation1 [shape = 'u32[144,128]{1,0:T(1,128)}', space=vmem, size = 0x12000, scoped, tag = 'internal scratch']
  %s0 = inlined_call_operand.hbm [shape: f32[2,4,2,128], index: 0, kind: input, shape index: {}]
  %s1 = inlined_call_operand.vmem [shape: s8[2,1,2,128], index: 1, kind: input, shape index: {}]
  %s2 = inlined_call_operand.vmem [shape: f32[2,1,128], index: 2, kind: output, shape index: {}]
  %s3 = sld [smem:[#allocation0]]
  $region49: #{_ce_sums.1} parent=0
    _
  %s5 = ssub.s32 1, %s3
  %s6 = scalar_select 0, %s5, %s3
  $region1: #{_ce_sums.1} parent=0
    #allocation2 [shape = 'u8[8192]{0}', space=vmem, size = 0x2000, scoped, tag = 'input window, operand 0']
    #allocation3 [shape = 's32[2]{0}', space=sflag, size = 0x8, scoped, tag = 'scoped memory for _ce_sums.1']
    %7 = vsyncpa [#allocation3], 0
    %s8 = scalar_lea.sflag [#allocation3], 1
    %9 = vsyncpa %s8, 0
    loop: start=0, step=1, limit=4
    $region2: #{_ce_sums.1} parent=1 // loop_pre_header
      _
    $region3: #{_ce_sums.1} parent=1 // loop_header
      %s11 = sphi 0, %s15
      %p12 = scmp.ge.s32.totalorder %s11, 4
      %s18 = sphi 0, %s37
      %s19 = sphi 0, %s33
      %s20 = sphi 0, %s29
      %s21 = sphi 0, %s18
      %s22 = sphi 0, %s19
      %s23 = sphi 0, %s20
      %s24 = sphi 0, %s21
      %s25 = sphi 0, %s22
      %s26 = sphi 0, %s23
      %s48 = sphi 0, %s50
      %s51 = sphi 0, %s48
      %s52 = sphi 0, %s51
      %s68 = sphi 0, %s52
      %s82 = sphi 0, %s84
      %s85 = sphi 0, %s82
      %s86 = sphi 0, %s85
      %s102 = sphi 0, %s86
      %s110 = sphi 0, %s112
      %s113 = sphi 0, %s110
      %s114 = sphi 0, %s113
      %s130 = sphi 0, %s114
    $region4: #{_ce_sums.1} parent=1 // loop_header_branch
      %14 = sbr.rel (%p12) target = $region8
    $region5: #{_ce_sums.1} parent=1 // loop_body
      %s16 = ssub.s32 %s11, 1
      %s17 = ssub.s32 %s11, 2
      %s27 = sadd.s32 1, %s20
      %p28 = scmp.ge.s32.totalorder %s27, 1
      %s29 = scalar_select %p28, 0, %s27
      %s30 = sadd.s32 1, %s19
      %s31 = scalar_select %p28, %s30, %s19
      %p32 = scmp.ge.s32.totalorder %s31, 1
      %s33 = scalar_select %p32, 0, %s31
      %s34 = sadd.s32 1, %s18
      %s35 = scalar_select %p32, %s34, %s18
      %p36 = scmp.ge.s32.totalorder %s35, 2
      %s37 = scalar_select %p36, 0, %s35
      %s38 = sadd.s32 %s19, %s20
      %p39 = scmp.lt.s32.totalorder %s38, 0
      %s40 = scalar_select %p39, %s38, 0
      %s41 = sadd.s32 %s33, %s29
      %p42 = scmp.lt.s32.totalorder %s41, 0
      %s43 = scalar_select %p42, %s41, 0
      %s44 = ssub.s32 %s18, %s37
      %s45 = ssub.s32 %s40, %s43
      %s46 = sor.u32 %s44, %s45
      %p47 = scmp.eq.s32.totalorder %s46, 0
      %s49 = sadd.s32 %s48, 1
      %s50 = scalar_select %p47, %s48, %s49
      %p53 = pneg %p47
      %p54 = scmp.eq.s32.totalorder %s11, 1
      %p55 = por %p53, %p54
      %p56 = scmp.ne.s32.totalorder %s48, %s51
      %p57 = scmp.eq.s32.totalorder %s11, 0
      %p58 = por %p56, %p57
      %p59 = scmp.ne.s32.totalorder %s48, %s51
      %p60 = scmp.eq.s32.totalorder %s16, 1
      %p61 = por %p59, %p60
      %p62 = scmp.ne.s32.totalorder %s51, %s52
      %p63 = scmp.eq.s32.totalorder %s16, 0
      %p64 = por %p62, %p63
      %p65 = scmp.ne.s32.totalorder %s51, %s52
      %p66 = scmp.eq.s32.totalorder %s17, 1
      %p67 = por %p65, %p66
      %p69 = scmp.ne.s32.totalorder %s52, %s68
      %p70 = scmp.eq.s32.totalorder %s17, 0
      %p71 = por %p69, %p70
      %s72 = sadd.s32 %s19, %s20
      %p73 = scmp.lt.s32.totalorder %s72, 0
      %s74 = scalar_select %p73, %s72, 0
      %s75 = sadd.s32 %s33, %s29
      %p76 = scmp.lt.s32.totalorder %s75, 0
      %s77 = scalar_select %p76, %s75, 0
      %s78 = ssub.s32 %s18, %s37
      %s79 = ssub.s32 %s74, %s77
      %s80 = sor.u32 %s78, %s79
      %p81 = scmp.eq.s32.totalorder %s80, 0
      %s83 = sadd.s32 %s82, 1
      %s84 = scalar_select %p81, %s82, %s83
      %p87 = pneg %p81
      %p88 = scmp.eq.s32.totalorder %s11, 1
      %p89 = por %p87, %p88
      %p90 = scmp.ne.s32.totalorder %s82, %s85
      %p91 = scmp.eq.s32.totalorder %s11, 0
      %p92 = por %p90, %p91
      %p93 = scmp.ne.s32.totalorder %s82, %s85
      %p94 = scmp.eq.s32.totalorder %s16, 1
      %p95 = por %p93, %p94
      %p96 = scmp.ne.s32.totalorder %s85, %s86
      %p97 = scmp.eq.s32.totalorder %s16, 0
      %p98 = por %p96, %p97
      %p99 = scmp.ne.s32.totalorder %s85, %s86
      %p100 = scmp.eq.s32.totalorder %s17, 1
      %p101 = por %p99, %p100
      %p103 = scmp.ne.s32.totalorder %s86, %s102
      %p104 = scmp.eq.s32.totalorder %s17, 0
      %p105 = por %p103, %p104
      %s106 = sadd.s32 %s18, %s19
      %s107 = sadd.s32 %s37, %s33
      %s108 = ssub.s32 %s106, %s107
      %p109 = scmp.eq.s32.totalorder %s108, 0
      %s111 = sadd.s32 %s110, 1
      %s112 = scalar_select %p109, %s110, %s111
      %p115 = pneg %p109
      %p116 = scmp.eq.s32.totalorder %s11, 1
      %p117 = por %p115, %p116
      %p118 = scmp.ne.s32.totalorder %s110, %s113
      %p119 = scmp.eq.s32.totalorder %s11, 0
      %p120 = por %p118, %p119
      %p121 = scmp.ne.s32.totalorder %s110, %s113
      %p122 = scmp.eq.s32.totalorder %s16, 1
      %p123 = por %p121, %p122
      %p124 = scmp.ne.s32.totalorder %s113, %s114
      %p125 = scmp.eq.s32.totalorder %s16, 0
      %p126 = por %p124, %p125
      %p127 = scmp.ne.s32.totalorder %s113, %s114
      %p128 = scmp.eq.s32.totalorder %s17, 1
      %p129 = por %p127, %p128
      %p131 = scmp.ne.s32.totalorder %s114, %s130
      %p132 = scmp.eq.s32.totalorder %s17, 0
      %p133 = por %p131, %p132
      %p134 = scmp.le.s32.totalorder 1, %s11
      %p135 = scmp.lt.s32.totalorder %s11, 3
      %p136 = pnand %p134, %p135
      %p137 = pneg %p136
      // Predicated region
      $region9: #{_ce_sums.1} parent=5 // pred_check
        _
      $region10: #{_ce_sums.1} parent=5 // pred_check_branch
        %139 = sbr.rel (%p136) target = $region12
      $region11: #{_ce_sums.1} parent=5 // pred_region
        %s140 = ssub.s32 %s11, 1
      $region12: #{_ce_sums.1} parent=5 // pred_fallthru
        _
      %p141 = scmp.lt.s32.totalorder %s11, 2
      // Predicated region
      $region13: #{_ce_sums.1} parent=5 // pred_check
        %p142 = pneg %p141
      $region14: #{_ce_sums.1} parent=5 // pred_check_branch
        %144 = sbr.rel (%p142) target = $region16
      $region15: #{_ce_sums.1} parent=5 // pred_region
        // Predicated region
        $region17: #{_ce_sums.1} parent=15 // pred_check
          %p145 = pneg %p58
        $region18: #{_ce_sums.1} parent=15 // pred_check_branch
          %147 = sbr.rel (%p145) target = $region20
        $region19: #{_ce_sums.1} parent=15 // pred_region
          %s148 = sand.u32 %s48, 1
          %s149 = scalar_lea.sflag [#allocation3], %s148
          %s150 = sand.u32 %s48, 1
          %s151 = smul.addr %s150, 8
          %s152 = scalar_lea.vmem [#allocation2], %s151
          %s153 = sadd.s32 %s19, %s20
          %p154 = scmp.lt.s32.totalorder %s153, 0
          %s155 = scalar_select %p154, %s153, 0
          %s157 = ssub.s32 128, 128
          %158 = vsyncadd %s149, %s157
          %s159 = smul.addr %s18, 4
          %s160 = sadd.s32 %s155, %s159
          %s161 = smul.addr %s160, 32
          %s162 = scalar_lea.hbm %s0, %s161
          %s163 = sshll.u32 %s152, 4
          %s164 = int_to_ptr.vmem [resolvable:$true] %s163
          %169 = dma.hbm_to_vmem [thread:$0]  %s162, 128, %s164, %s149, 32, 32, 2
        $region20: #{_ce_sums.1} parent=15 // pred_fallthru
          _
        // Predicated region
        $region21: #{_ce_sums.1} parent=15 // pred_check
          %p170 = pneg %p92
        $region22: #{_ce_sums.1} parent=15 // pred_check_branch
          %172 = sbr.rel (%p170) target = $region24
        $region23: #{_ce_sums.1} parent=15 // pred_region
          %s173 = sadd.s32 %s19, %s20
          %p174 = scmp.lt.s32.totalorder %s173, 0
          %s175 = scalar_select %p174, %s173, 0
          %p176 = scmp.lt.s32.totalorder %s18, 1
          %s177 = scalar_select %p176, %s18, 1
          %p178 = scmp.lt.s32.totalorder %s175, 0
          %s179 = scalar_select %p178, %s175, 0
          %s180 = sadd.s32 %s179, %s177
          %s181 = scalar_lea.vmem %s1, %s180
          %s182 = sadd.s32 %s19, %s20
          %p183 = scmp.lt.s32.totalorder %s182, 0
          %s184 = scalar_select %p183, %s182, 0
        $region24: #{_ce_sums.1} parent=15 // pred_fallthru
          _
      $region16: #{_ce_sums.1} parent=5 // pred_fallthru
        _
      %p185 = scmp.le.s32.totalorder 1, %s11
      %p186 = scmp.lt.s32.totalorder %s11, 3
      %p187 = pnand %p185, %p186
      %p188 = pneg %p187
      // Predicated region
      $region25: #{_ce_sums.1} parent=5 // pred_check
        _
      $region26: #{_ce_sums.1} parent=5 // pred_check_branch
        %190 = sbr.rel (%p187) target = $region28
      $region27: #{_ce_sums.1} parent=5 // pred_region
        %s191 = ssub.s32 %s11, 1
        %s192 = sand.u32 %s51, 1
        %s193 = scalar_lea.sflag [#allocation3], %s192
        %s194 = sand.u32 %s51, 1
        %s195 = smul.addr %s194, 8
        %s196 = scalar_lea.vmem [#allocation2], %s195
        // Predicated region
        $region29: #{_ce_sums.1} parent=27 // pred_check
          %p197 = pneg %p64
        $region30: #{_ce_sums.1} parent=27 // pred_check_branch
          %199 = sbr.rel (%p197) target = $region32
        $region31: #{_ce_sums.1} parent=27 // pred_region
          %200 = dma.done %s193, 128
        $region32: #{_ce_sums.1} parent=27 // pred_fallthru
          _
        %s201 = sand.u32 %s51, 1
        %s202 = scalar_lea.sflag [#allocation3], %s201
        %s203 = sand.u32 %s51, 1
        %s204 = smul.addr %s203, 8
        %s205 = scalar_lea.vmem [#allocation2], %s204
        %p206 = pneg %p64
        %p207 = pneg %p61
        %s208 = sadd.s32 %s22, %s23
        %p209 = scmp.lt.s32.totalorder %s208, 0
        %s210 = scalar_select %p209, %s208, 0
        %p211 = scmp.lt.s32.totalorder %s21, 1
        %s212 = scalar_select %p211, %s21, 1
        %p213 = scmp.lt.s32.totalorder %s210, 0
        %s214 = scalar_select %p213, %s210, 0
        %s215 = sadd.s32 %s214, %s212
        %s216 = scalar_lea.vmem %s1, %s215
        %p217 = pneg %p98
        %p218 = pneg %p95
        %p219 = pneg %p126
        %p220 = pneg %p123
        %s221 = sadd.s32 %s21, %s22
        %p222 = scmp.lt.s32.totalorder %s221, 1
        %s223 = scalar_select %p222, %s221, 1
        %s224 = scalar_lea.vmem %s2, %s223
        %s225 = sadd.s32 %s22, %s23
        %p226 = scmp.lt.s32.totalorder %s225, 0
        %s227 = scalar_select %p226, %s225, 0
        %s228 = sadd.s32 %s22, %s23
        %p229 = scmp.lt.s32.totalorder %s228, 0
        %s230 = scalar_select %p229, %s228, 0
        %p231 = scmp.lt.s32.totalorder %s21, 1
        %s232 = scalar_select %p231, %s21, 1
        %p233 = scmp.lt.s32.totalorder %s230, 0
        %s234 = scalar_select %p233, %s230, 0
        %s235 = sadd.s32 %s234, %s232
        %s236 = scalar_lea.vmem %s1, %s235
        %s237 = sadd.s32 %s22, %s23
        %p238 = scmp.lt.s32.totalorder %s237, 0
        %s239 = scalar_select %p238, %s237, 0
        %s240 = sadd.s32 %s21, %s22
        %p241 = scmp.lt.s32.totalorder %s240, 1
        %s242 = scalar_select %p241, %s240, 1
        %s243 = scalar_lea.vmem %s2, %s242
        %s244 = sadd.s32 %s21, %s22
        %p245 = scmp.eq.s32.totalorder %s23, 0
        // Predicated region
        $region33: #{_ce_sums.1} parent=27 // pred_check
          %p246 = pneg %p245
        $region34: #{_ce_sums.1} parent=27 // pred_check_branch
          %248 = sbr.rel (%p246) target = $region36
        $region35: #{_ce_sums.1} parent=27 // pred_region
          %249 = vst [vmem:[%s243] sm:$0x1] 0.0
        $region36: #{_ce_sums.1} parent=27 // pred_fallthru
          _
        %v250 = vld [vmem:[%s236] sm:$0x1]
        %v251 = vunpack.c.0.s8 %v250
        %v252 = vld [vmem:[%s196] sm:$0x3]
        %s253 = scalar_lea.vmem %s196, 2 [#allocation2]
        %v254 = vld [vmem:[%s253] sm:$0x3]
        %s255 = scalar_lea.vmem %s196, 4 [#allocation2]
        %v256 = vld [vmem:[%s255] sm:$0x3]
        %s257 = scalar_lea.vmem %s196, 6 [#allocation2]
        %v258 = vld [vmem:[%s257] sm:$0x3]
        %v259 = vmax.f32 %v252, %v254
        %v260 = vmax.f32 %v259, %v256
        %v261 = vmax.f32 %v260, %v258
        %v262 = vsub.f32 %v252, %v261
        %v263 = vmul.f32 %v262, 1.442695
        %v264 = vpow.pop %v263
        %v265 = vsub.f32 %v254, %v261
        %v266 = vmul.f32 %v265, 1.442695
        %v267 = vpow.pop %v266
        %v268 = vadd.f32 %v264, %v267
        %vm269 = vcmp.eq.s32.totalorder %v251, 1
        %v270 = vsel %vm269, %v254, %v252
        %v271 = vsub.f32 %v256, %v261
        %v272 = vmul.f32 %v271, 1.442695
        %v273 = vpow.pop %v272
        %v274 = vadd.f32 %v268, %v273
        %vm275 = vcmp.eq.s32.totalorder %v251, 2
        %v276 = vsel %vm275, %v256, %v270
        %v277 = vsub.f32 %v258, %v261
        %v278 = vmul.f32 %v277, 1.442695
        %v279 = vpow.pop %v278
        %v280 = vadd.f32 %v274, %v279
        %vm281 = vcmp.eq.s32.totalorder %v251, 3
        %v282 = vsel %vm281, %v258, %v276
        %v283 = vlog2.pop %v280
        %v284 = vmul.f32 %v283, 0.6931472
        %v285 = vadd.f32 %v261, %v284
        %v286 = vsub.f32 %v285, %v282
        %s287 = sadd.s32 %s22, %s23
        %s288 = smul.u32 %s287, 2
        %v289 = vlaneseq
        %v290 = vshrl.u32 %v289, 7
        %v291 = vlaneseq
        %v292 = vand.u32 %v291, 127
        %v293 = vstv %s288
        %v294 = vadd.s32 %v293, %v290
        %v295 = vmul.u32 %v294, 128
        %v296 = vadd.s32 %v295, %v292
        %vm297 = vcmp.lt.s32.totalorder %v296, 256
        %vm298 = vcmp.ne.s32.totalorder %v251, 0
        %vm299 = vmand %vm297, %vm298
        %v300 = vsel %vm299, %v286, 0.0
        %vm301 = vcmask 1041408
        %v302 = vsel %vm301, %v300, 0.0
        %v303 = vrot.slane %v302, 4
        %v304 = vadd.f32 %v302, %v303
        %v305 = vrot.slane %v304, 2
        %v306 = vadd.f32 %v304, %v305
        %v307 = vrot.slane %v306, 1
        %v308 = vadd.f32 %v306, %v307
        %v309 = vld [vmem:[%s243] sm:$0x1]
        %v310 = vadd.f32 %v309, %v308
        %311 = vst [vmem:[%s243] sm:$0x1] %v310
        %s312 = sadd.s32 %s21, %s22
        %p313 = scmp.lt.s32.totalorder %s312, 1
        %s314 = scalar_select %p313, %s312, 1
        %s315 = scalar_lea.vmem %s2, %s314
        // Predicated region
        $region37: #{_ce_sums.1} parent=27 // pred_check
          %p316 = pneg %p123
        $region38: #{_ce_sums.1} parent=27 // pred_check_branch
          %318 = sbr.rel (%p316) target = $region40
        $region39: #{_ce_sums.1} parent=27 // pred_region
          %s319 = sadd.s32 %s21, %s22
        $region40: #{_ce_sums.1} parent=27 // pred_fallthru
          _
      $region28: #{_ce_sums.1} parent=5 // pred_fallthru
        _
      %p320 = scmp.le.s32.totalorder 2, %s11
      // Predicated region
      $region41: #{_ce_sums.1} parent=5 // pred_check
        %p321 = pneg %p320
      $region42: #{_ce_sums.1} parent=5 // pred_check_branch
        %323 = sbr.rel (%p321) target = $region44
      $region43: #{_ce_sums.1} parent=5 // pred_region
        %s324 = ssub.s32 %s11, 2
        // Predicated region
        $region45: #{_ce_sums.1} parent=43 // pred_check
          %p325 = pneg %p129
        $region46: #{_ce_sums.1} parent=43 // pred_check_branch
          %327 = sbr.rel (%p325) target = $region48
        $region47: #{_ce_sums.1} parent=43 // pred_region
          %s328 = sadd.s32 %s24, %s25
          %p329 = scmp.lt.s32.totalorder %s328, 1
          %s330 = scalar_select %p329, %s328, 1
          %s331 = scalar_lea.vmem %s2, %s330
        $region48: #{_ce_sums.1} parent=43 // pred_fallthru
          _
      $region44: #{_ce_sums.1} parent=5 // pred_fallthru
        _
    $region6: #{_ce_sums.1} parent=1 // loop_footer
      %s15 = sadd.s32 1, %s11
    $region7: #{_ce_sums.1} parent=1 // loop_footer_branch
      %10 = sbr.rel target = $region3
    $region8: #{_ce_sums.1} parent=1 // loop_exit
      _
    %332 = vsyncpa [#allocation3], 1
    %s333 = scalar_lea.sflag [#allocation3], 1
    %334 = vsyncpa %s333, 1

</llo_original>
